<compile_context>
chip_gen: v7x
topology: tpu7x:2x2x1
jax: 0.10.0
libtpu: 0.0.40
codegen_flags: <defaults>
</compile_context>

<pallas_src>
import functools

import jax
import jax.numpy as jnp
from jax import lax
from jax.experimental import pallas as pl
from jax.experimental.pallas import tpu as pltpu

LANE = 128
SUBLANE = 8


def _round_up(n, m):
    return ((n + m - 1) // m) * m


def _pad_2d(a, rows, cols):
    return jnp.pad(a, ((0, rows - a.shape[0]), (0, cols - a.shape[1])))


# -----------------------------------------------------------------------------
# Fused kernel (one grid step = one tile of rows):
#   h    = relu(x @ W1 + b1) @ W2 + b2        (target_encoder -> Target.forward)
#   loss partials: per-tile sum_i zn_i  and  sum_i ||zn_i||^2, zn = normalize(h)
#   (wrapper combines:  loss = -(mean||zn||^2 - ||mean zn||^2)
#                            == -(zn - zn.mean(0)).pow(2).sum(1).mean())
# -----------------------------------------------------------------------------
def fused_target_kernel(x_ref, w1_ref, b1_ref, w2_ref, b2_ref,
                        h_ref, part_ref, *, n_true, tile_m):
    # ---- encoder forward: bf16 operands on the MXU, f32 accumulate/elementwise
    h1 = jnp.dot(x_ref[...], w1_ref[...], preferred_element_type=jnp.float32)
    h1 = jnp.maximum(h1 + b1_ref[...], 0.0)
    h = jnp.dot(h1.astype(jnp.bfloat16), w2_ref[...],
                preferred_element_type=jnp.float32) + b2_ref[...]
    h_ref[...] = h  # Target.forward result tile (padded lanes/rows sliced later)

    # ---- Target.get_loss partial sums on the same VMEM tile (no HBM round-trip)
    # Mask padded batch rows (they hold h != 0 and must not bias the loss).
    i = pl.program_id(0)
    row = i * tile_m + lax.broadcasted_iota(jnp.int32, (tile_m, 1), 0)
    valid = (row < n_true).astype(jnp.float32)              # (tile_m, 1)

    ss = jnp.sum(h * h, axis=-1, keepdims=True)              # (tile_m, 1)
    inv = lax.rsqrt(jnp.maximum(ss, 1e-24))                   # == 1/max(||h||,1e-12)
    zn = h * inv
    zn_sum = jnp.sum(zn * valid, axis=0, keepdims=True)       # (1, Dp)  sum_i zn_i
    ss_sum = jnp.sum(ss * inv * inv * valid)                  # scalar   sum_i ||zn_i||^2

    # One unmasked (8, Dp) store: row 0 = sum zn, row 1 = sum ||zn||^2 (bcast).
    d = part_ref.shape[1]
    part_ref[...] = jnp.concatenate(
        [zn_sum,
         jnp.full((1, d), ss_sum, dtype=jnp.float32),
         jnp.zeros((SUBLANE - 2, d), jnp.float32)],
        axis=0)


# -----------------------------------------------------------------------------
# One-time parameter preparation (pad feature dims to 128 lanes, cast matmul
# operands to bf16).  Done ONCE at init, not per forward call.
# -----------------------------------------------------------------------------
def prepare_target_params(w1, b1, w2, b2):
    d_in, d_hid = w1.shape
    d_out = w2.shape[1]
    d_in_p = _round_up(d_in, LANE)
    d_hid_p = _round_up(d_hid, LANE)
    d_out_p = _round_up(d_out, LANE)
    w1p = _pad_2d(w1, d_in_p, d_hid_p).astype(jnp.bfloat16)
    b1p = _pad_2d(b1.reshape(1, -1), 1, d_hid_p).astype(jnp.float32)
    w2p = _pad_2d(w2, d_hid_p, d_out_p).astype(jnp.bfloat16)
    b2p = _pad_2d(b2.reshape(1, -1), 1, d_out_p).astype(jnp.float32)
    return w1p, b1p, w2p, b2p, d_out


# -----------------------------------------------------------------------------
# Hot-path wrapper: pads/casts only x, runs the single fused pallas_call over an
# N-grid with VMEM-resident weights, and combines the per-tile loss partials.
#   forward  == first return value (h_target)
#   get_loss == second return value (scalar)
# -----------------------------------------------------------------------------
@functools.partial(jax.jit, static_argnames=("d_out",))
def target_forward_and_loss(x, w1p, b1p, w2p, b2p, *, d_out):
    n_true, d_in = x.shape
    d_in_p, d_hid_p = w1p.shape
    d_out_p = w2p.shape[1]

    # Row tile: multiple of 16 (bf16 sublane packing) and of 8 (f32 outputs).
    tile_m = min(256, _round_up(n_true, 16))
    n_pad = _round_up(n_true, tile_m)
    num_tiles = n_pad // tile_m

    xp = jnp.pad(x, ((0, n_pad - n_true), (0, d_in_p - d_in))).astype(jnp.bfloat16)

    kernel = functools.partial(fused_target_kernel, n_true=n_true, tile_m=tile_m)

    flops = 2 * n_pad * (d_in_p * d_hid_p + d_hid_p * d_out_p) + 10 * n_pad * d_out_p
    bytes_accessed = (
        2 * (xp.size + w1p.size + w2p.size)                    # bf16 inputs
        + 4 * (b1p.size + b2p.size)                            # f32 biases
        + 4 * (n_pad * d_out_p + num_tiles * SUBLANE * d_out_p)  # f32 outputs
    )
    cost = pl.CostEstimate(flops=flops, transcendentals=n_pad,
                           bytes_accessed=bytes_accessed)

    h_pad, parts = pl.pallas_call(
        kernel,
        out_shape=(jax.ShapeDtypeStruct((n_pad, d_out_p), jnp.float32),
                   jax.ShapeDtypeStruct((num_tiles * SUBLANE, d_out_p), jnp.float32)),
        grid=(num_tiles,),
        in_specs=[
            # x streams per row tile.
            pl.BlockSpec((tile_m, d_in_p), lambda i: (i, 0)),
            # Weights/biases: constant block index -> DMA'd once, VMEM-resident.
            pl.BlockSpec((d_in_p, d_hid_p), lambda i: (0, 0)),
            pl.BlockSpec((1, d_hid_p), lambda i: (0, 0)),
            pl.BlockSpec((d_hid_p, d_out_p), lambda i: (0, 0)),
            pl.BlockSpec((1, d_out_p), lambda i: (0, 0)),
        ],
        out_specs=(
            pl.BlockSpec((tile_m, d_out_p), lambda i: (i, 0)),
            pl.BlockSpec((SUBLANE, d_out_p), lambda i: (i, 0)),
        ),
        cost_estimate=cost,
        compiler_params=pltpu.CompilerParams(
            dimension_semantics=("parallel",),          # v7x: 2 TCs share row tiles
            vmem_limit_bytes=48 * 1024 * 1024),         # budgeted for v7x 64 MiB VMEM
    )(xp, w1p, b1p, w2p, b2p)

    h_target = h_pad[:n_true, :d_out]

    # Final loss reduction over per-tile partials (tiny; done in the wrapper so
    # the parallel N axis stays race-free).
    parts = parts.reshape(num_tiles, SUBLANE, d_out_p)
    zn_sum = jnp.sum(parts[:, 0, :], axis=0)             # sum_i zn_i   (Dp,)
    ss_sum = jnp.sum(parts[:, 1, 0])                      # sum_i ||zn_i||^2
    mu = zn_sum / n_true
    loss = -(ss_sum / n_true - jnp.sum(mu * mu))
    return h_target, loss


# -----------------------------------------------------------------------------
# Main
# -----------------------------------------------------------------------------
if __name__ == "__main__":
    key = jax.random.PRNGKey(0)
    k_x, k_w1, k_b1, k_w2, k_b2 = jax.random.split(key, 5)

    N, D_in, D_hid, D_out = 8, 32, 64, 32  # small synthetic shapes

    x = jax.random.normal(k_x, (N, D_in), dtype=jnp.float32)
    # Deterministic parameter init (synthetic target_encoder weights).
    w1 = jax.random.normal(k_w1, (D_in, D_hid), dtype=jnp.float32) * 0.1
    b1 = jax.random.normal(k_b1, (1, D_hid), dtype=jnp.float32) * 0.01
    w2 = jax.random.normal(k_w2, (D_hid, D_out), dtype=jnp.float32) * 0.1
    b2 = jax.random.normal(k_b2, (1, D_out), dtype=jnp.float32) * 0.01

    # One-time param prep (padding + bf16 cast hoisted out of the hot path).
    w1p, b1p, w2p, b2p, d_out = prepare_target_params(w1, b1, w2, b2)

    # Fused Target.forward + Target.get_loss (single pallas_call).
    h_target, loss = target_forward_and_loss(x, w1p, b1p, w2p, b2p, d_out=d_out)
    h_target, loss = jax.block_until_ready((h_target, loss))

    # Reference in plain JAX with the same math (bf16 MXU operands, f32 accum).
    xb, w1b, w2b = (a.astype(jnp.bfloat16) for a in (x, w1, w2))
    h1_ref = jnp.maximum(
        jnp.dot(xb, w1b, preferred_element_type=jnp.float32) + b1, 0.0)
    h_ref = jnp.dot(h1_ref.astype(jnp.bfloat16), w2b,
                    preferred_element_type=jnp.float32) + b2
    zn_ref = h_ref / jnp.maximum(
        jnp.sqrt(jnp.sum(h_ref * h_ref, axis=-1, keepdims=True)), 1e-12)
    loss_ref = -jnp.mean(jnp.sum((zn_ref - zn_ref.mean(axis=0)) ** 2, axis=1))

    assert h_target.shape == (N, D_out)
    assert jnp.allclose(h_target, h_ref, atol=1e-3, rtol=1e-3)
    assert jnp.allclose(loss, loss_ref, atol=1e-4)

    # Loose sanity check against full-f32 math (bf16 MXU operands only change
    # the result at the ~1e-3 level for these magnitudes).
    h_f32 = jnp.maximum(x @ w1 + b1, 0.0) @ w2 + b2
    assert jnp.allclose(h_target, h_f32, atol=5e-2, rtol=5e-2)

    print("KERNEL_OK")
</pallas_src>

<mosaic_0001>
module attributes {stable_mosaic.version = 11 : i64} {
  func.func @fused_target_kernel(%arg0: i32, %arg1: memref<16x128xbf16, #tpu.memory_space<vmem>>, %arg2: memref<128x128xbf16, #tpu.memory_space<vmem>>, %arg3: memref<1x128xf32, #tpu.memory_space<vmem>>, %arg4: memref<128x128xbf16, #tpu.memory_space<vmem>>, %arg5: memref<1x128xf32, #tpu.memory_space<vmem>>, %arg6: memref<16x128xf32, #tpu.memory_space<vmem>>, %arg7: memref<8x128xf32, #tpu.memory_space<vmem>>) attributes {dimension_semantics = [#tpu.dimension_semantics<parallel>], iteration_bounds = array<i64: 1>, scalar_prefetch = 0 : i64, scratch_operands = 0 : i64, tpu.core_type = #tpu.core_type<tc>, window_params = [{transform_indices = @transform_0, window_bounds = array<i64: 16, 128>}, {pipeline_mode = #tpu.pipeline_mode<synchronous>, transform_indices = @transform_1, window_bounds = array<i64: 128, 128>}, {pipeline_mode = #tpu.pipeline_mode<synchronous>, transform_indices = @transform_2, window_bounds = array<i64: 1, 128>}, {pipeline_mode = #tpu.pipeline_mode<synchronous>, transform_indices = @transform_3, window_bounds = array<i64: 128, 128>}, {pipeline_mode = #tpu.pipeline_mode<synchronous>, transform_indices = @transform_4, window_bounds = array<i64: 1, 128>}, {transform_indices = @transform_5, window_bounds = array<i64: 16, 128>}, {transform_indices = @transform_6, window_bounds = array<i64: 8, 128>}]} {
    %c0 = arith.constant 0 : index
    %c0_0 = arith.constant 0 : index
    %0 = vector.load %arg1[%c0, %c0_0] : memref<16x128xbf16, #tpu.memory_space<vmem>>, vector<16x128xbf16>
    %c0_1 = arith.constant 0 : index
    %c0_2 = arith.constant 0 : index
    %1 = vector.load %arg2[%c0_1, %c0_2] : memref<128x128xbf16, #tpu.memory_space<vmem>>, vector<128x128xbf16>
    %cst = arith.constant dense<0.000000e+00> : vector<16x128xf32>
    %2 = tpu.matmul %0, %1, %cst {dimension_numbers = #tpu.dot_dimension_numbers<[1], [0], [0], [1], [0, 0, 1, 1], [], []>} : vector<16x128xbf16>, vector<128x128xbf16>, vector<16x128xf32> -> vector<16x128xf32>
    %c0_3 = arith.constant 0 : index
    %c0_4 = arith.constant 0 : index
    %3 = vector.load %arg3[%c0_3, %c0_4] : memref<1x128xf32, #tpu.memory_space<vmem>>, vector<1x128xf32>
    %4 = vector.broadcast %3 : vector<1x128xf32> to vector<16x128xf32>
    %5 = arith.addf %2, %4 : vector<16x128xf32>
    %cst_5 = arith.constant 0.000000e+00 : f32
    %6 = vector.broadcast %cst_5 : f32 to vector<16x128xf32>
    %7 = arith.maximumf %5, %6 : vector<16x128xf32>
    %8 = arith.truncf %7 : vector<16x128xf32> to vector<16x128xbf16>
    %c0_6 = arith.constant 0 : index
    %c0_7 = arith.constant 0 : index
    %9 = vector.load %arg4[%c0_6, %c0_7] : memref<128x128xbf16, #tpu.memory_space<vmem>>, vector<128x128xbf16>
    %cst_8 = arith.constant dense<0.000000e+00> : vector<16x128xf32>
    %10 = tpu.matmul %8, %9, %cst_8 {dimension_numbers = #tpu.dot_dimension_numbers<[1], [0], [0], [1], [0, 0, 1, 1], [], []>} : vector<16x128xbf16>, vector<128x128xbf16>, vector<16x128xf32> -> vector<16x128xf32>
    %c0_9 = arith.constant 0 : index
    %c0_10 = arith.constant 0 : index
    %11 = vector.load %arg5[%c0_9, %c0_10] : memref<1x128xf32, #tpu.memory_space<vmem>>, vector<1x128xf32>
    %12 = vector.broadcast %11 : vector<1x128xf32> to vector<16x128xf32>
    %13 = arith.addf %10, %12 : vector<16x128xf32>
    %c0_11 = arith.constant 0 : index
    %c0_12 = arith.constant 0 : index
    %14 = vector.load %arg6[%c0_11, %c0_12] : memref<16x128xf32, #tpu.memory_space<vmem>>, vector<16x128xf32>
    tpu.vector_store %arg6[%c0_11, %c0_12], %13 {strides = array<i32>} : memref<16x128xf32, #tpu.memory_space<vmem>>, vector<16x128xf32>,
    %c16_i32 = arith.constant 16 : i32
    %15 = arith.muli %arg0, %c16_i32 : i32
    %16 = tpu.iota {dimensions = array<i32: 0>} : vector<16x1xi32>
    %17 = vector.broadcast %15 : i32 to vector<16x1xi32>
    %18 = arith.addi %17, %16 : vector<16x1xi32>
    %c8_i32 = arith.constant 8 : i32
    %19 = vector.broadcast %c8_i32 : i32 to vector<16x1xi32>
    %20 = arith.cmpi slt, %18, %19 : vector<16x1xi32>
    %21 = arith.extui %20 : vector<16x1xi1> to vector<16x1xi32>
    %22 = arith.sitofp %21 : vector<16x1xi32> to vector<16x1xf32>
    %23 = arith.mulf %13, %13 : vector<16x128xf32>
    %cst_13 = arith.constant dense<0.000000e+00> : vector<16xf32>
    %24 = vector.multi_reduction <add>, %23, %cst_13 [1] : vector<16x128xf32> to vector<16xf32>
    %25 = vector.shape_cast %24 : vector<16xf32> to vector<16x1xf32>
    %cst_14 = arith.constant 1.000000e-24 : f32
    %26 = vector.broadcast %cst_14 : f32 to vector<16x1xf32>
    %27 = arith.maximumf %25, %26 : vector<16x1xf32>
    %28 = math.rsqrt %27 : vector<16x1xf32>
    %29 = vector.broadcast %28 : vector<16x1xf32> to vector<16x128xf32>
    %30 = arith.mulf %13, %29 : vector<16x128xf32>
    %31 = vector.broadcast %22 : vector<16x1xf32> to vector<16x128xf32>
    %32 = arith.mulf %30, %31 : vector<16x128xf32>
    %cst_15 = arith.constant dense<0.000000e+00> : vector<128xf32>
    %33 = vector.multi_reduction <add>, %32, %cst_15 [0] : vector<16x128xf32> to vector<128xf32>
    %34 = vector.shape_cast %33 : vector<128xf32> to vector<1x128xf32>
    %35 = arith.mulf %25, %28 : vector<16x1xf32>
    %36 = arith.mulf %35, %28 : vector<16x1xf32>
    %37 = arith.mulf %36, %22 : vector<16x1xf32>
    %38 = vector.shape_cast %37 : vector<16x1xf32> to vector<1x16x1xf32>
    %cst_16 = arith.constant dense<0.000000e+00> : vector<1xf32>
    %39 = vector.multi_reduction <add>, %38, %cst_16 [1, 2] : vector<1x16x1xf32> to vector<1xf32>
    %40 = vector.shape_cast %39 : vector<1xf32> to vector<1x1x1xf32>
    %41 = vector.extract %40[0, 0, 0] : f32 from vector<1x1x1xf32>
    %42 = vector.broadcast %41 : f32 to vector<1x128xf32>
    %cst_17 = arith.constant 0.000000e+00 : f32
    %43 = vector.broadcast %cst_17 : f32 to vector<6x128xf32>
    %44 = tpu.concatenate %34, %42, %43 in 0 : vector<1x128xf32>, vector<1x128xf32>, vector<6x128xf32> -> vector<8x128xf32>
    %c0_18 = arith.constant 0 : index
    %c0_19 = arith.constant 0 : index
    %45 = vector.load %arg7[%c0_18, %c0_19] : memref<8x128xf32, #tpu.memory_space<vmem>>, vector<8x128xf32>
    tpu.vector_store %arg7[%c0_18, %c0_19], %44 {strides = array<i32>} : memref<8x128xf32, #tpu.memory_space<vmem>>, vector<8x128xf32>,
    return
  }
  func.func @transform_0(%arg0: i32) -> (i32, i32) {
    %c0_i32 = arith.constant 0 : i32
    %c0_i32_0 = arith.constant 0 : i32
    return %arg0, %c0_i32 : i32, i32
  }
  func.func @transform_1(%arg0: i32) -> (i32, i32) {
    %c0_i32 = arith.constant 0 : i32
    %c0_i32_0 = arith.constant 0 : i32
    %c0_i32_1 = arith.constant 0 : i32
    return %c0_i32, %c0_i32_0 : i32, i32
  }
  func.func @transform_2(%arg0: i32) -> (i32, i32) {
    %c0_i32 = arith.constant 0 : i32
    %c0_i32_0 = arith.constant 0 : i32
    %c0_i32_1 = arith.constant 0 : i32
    return %c0_i32, %c0_i32_0 : i32, i32
  }
  func.func @transform_3(%arg0: i32) -> (i32, i32) {
    %c0_i32 = arith.constant 0 : i32
    %c0_i32_0 = arith.constant 0 : i32
    %c0_i32_1 = arith.constant 0 : i32
    return %c0_i32, %c0_i32_0 : i32, i32
  }
  func.func @transform_4(%arg0: i32) -> (i32, i32) {
    %c0_i32 = arith.constant 0 : i32
    %c0_i32_0 = arith.constant 0 : i32
    %c0_i32_1 = arith.constant 0 : i32
    return %c0_i32, %c0_i32_0 : i32, i32
  }
  func.func @transform_5(%arg0: i32) -> (i32, i32) {
    %c0_i32 = arith.constant 0 : i32
    %c0_i32_0 = arith.constant 0 : i32
    return %arg0, %c0_i32 : i32, i32
  }
  func.func @transform_6(%arg0: i32) -> (i32, i32) {
    %c0_i32 = arith.constant 0 : i32
    %c0_i32_0 = arith.constant 0 : i32
    return %arg0, %c0_i32 : i32, i32
  }
}

</mosaic_0001>

<llo_original>
// kernel: target_forward_and_loss.1
$region0: #{target_forward_and_loss.1}
  #allocation0 [shape = 'u32[]', space=smem, size = 0x4, offset = 0x4, fixed_abs, tag = 'smem constant byte address 0x4 - core index']
  #allocation1 [shape = 'u32[144,128]{1,0:T(1,128)}', space=vmem, size = 0x12000, scoped, tag = 'internal scratch']
  %s0 = inlined_call_operand.vmem [shape: bf16[16,128], index: 0, kind: input, shape index: {}]
  %s1 = inlined_call_operand.hbm [shape: bf16[128,128], index: 1, kind: input, shape index: {}]
  %s2 = inlined_call_operand.vmem [shape: f32[1,128], index: 2, kind: input, shape index: {}]
  %s3 = inlined_call_operand.hbm [shape: bf16[128,128], index: 3, kind: input, shape index: {}]
  %s4 = inlined_call_operand.vmem [shape: f32[1,128], index: 4, kind: input, shape index: {}]
  %s5 = inlined_call_operand.vmem [shape: f32[16,128], index: 5, kind: output, shape index: {0}]
  %s6 = inlined_call_operand.vmem [shape: f32[8,128], index: 6, kind: output, shape index: {1}]
  %7 = xla_tuple %s5, %s6
  %s8 = sld [smem:[#allocation0]]
  $region46: #{target_forward_and_loss.1} parent=0
    _
  %s10 = ssub.s32 1, %s8
  %s11 = scalar_select 0, %s10, %s8
  $region1: #{target_forward_and_loss.1} parent=0
    #allocation2 [shape = 'u8[32768]{0}', space=vmem, size = 0x8000, scoped, tag = 'input window, operand 1, single buffered']
    #allocation3 [shape = 's32[1]{0}', space=sflag, size = 0x4, scoped, tag = 'scoped memory for target_forward_and_loss.1']
    #allocation4 [shape = 'u8[32768]{0}', space=vmem, size = 0x8000, scoped, tag = 'input window, operand 3, single buffered']
    #allocation5 [shape = 's32[1]{0}', space=sflag, size = 0x4, scoped, tag = 'scoped memory for target_forward_and_loss.1']
    %12 = vsyncpa [#allocation3], 0
    %13 = vsyncpa [#allocation5], 0
    // Predicated region
    $region2: #{target_forward_and_loss.1} parent=1 // pred_check
      _
    $region3: #{target_forward_and_loss.1} parent=1 // pred_check_branch
      %15 = sbr.rel (0) target = $region5
    $region4: #{target_forward_and_loss.1} parent=1 // pred_region
      _
    $region5: #{target_forward_and_loss.1} parent=1 // pred_fallthru
      _
    // Predicated region
    $region6: #{target_forward_and_loss.1} parent=1 // pred_check
      _
    $region7: #{target_forward_and_loss.1} parent=1 // pred_check_branch
      %17 = sbr.rel (0) target = $region9
    $region8: #{target_forward_and_loss.1} parent=1 // pred_region
      %s19 = ssub.s32 1024, 1024
      %20 = vsyncadd [#allocation3], %s19
      %s21 = sshll.u32 [#allocation2], 4
      %s22 = int_to_ptr.vmem [resolvable:$true] %s21
      %27 = dma.hbm_to_vmem [thread:$0]  %s1, 1024, %s22, [#allocation3], 64, 64, 4
    $region9: #{target_forward_and_loss.1} parent=1 // pred_fallthru
      _
    // Predicated region
    $region10: #{target_forward_and_loss.1} parent=1 // pred_check
      _
    $region11: #{target_forward_and_loss.1} parent=1 // pred_check_branch
      %29 = sbr.rel (0) target = $region13
    $region12: #{target_forward_and_loss.1} parent=1 // pred_region
      _
    $region13: #{target_forward_and_loss.1} parent=1 // pred_fallthru
      _
    // Predicated region
    $region14: #{target_forward_and_loss.1} parent=1 // pred_check
      _
    $region15: #{target_forward_and_loss.1} parent=1 // pred_check_branch
      %31 = sbr.rel (0) target = $region17
    $region16: #{target_forward_and_loss.1} parent=1 // pred_region
      %s33 = ssub.s32 1024, 1024
      %34 = vsyncadd [#allocation5], %s33
      %s35 = sshll.u32 [#allocation4], 4
      %s36 = int_to_ptr.vmem [resolvable:$true] %s35
      %41 = dma.hbm_to_vmem [thread:$0]  %s3, 1024, %s36, [#allocation5], 64, 64, 4
    $region17: #{target_forward_and_loss.1} parent=1 // pred_fallthru
      _
    // Predicated region
    $region18: #{target_forward_and_loss.1} parent=1 // pred_check
      _
    $region19: #{target_forward_and_loss.1} parent=1 // pred_check_branch
      %43 = sbr.rel (0) target = $region21
    $region20: #{target_forward_and_loss.1} parent=1 // pred_region
      _
    $region21: #{target_forward_and_loss.1} parent=1 // pred_fallthru
      _
    // Predicated region
    $region22: #{target_forward_and_loss.1} parent=1 // pred_check
      _
    $region23: #{target_forward_and_loss.1} parent=1 // pred_check_branch
      %45 = sbr.rel (0) target = $region25
    $region24: #{target_forward_and_loss.1} parent=1 // pred_region
      %46 = dma.done [#allocation3], 1024
    $region25: #{target_forward_and_loss.1} parent=1 // pred_fallthru
      _
    // Predicated region
    $region26: #{target_forward_and_loss.1} parent=1 // pred_check
      _
    $region27: #{target_forward_and_loss.1} parent=1 // pred_check_branch
      %48 = sbr.rel (0) target = $region29
    $region28: #{target_forward_and_loss.1} parent=1 // pred_region
      %49 = dma.done [#allocation5], 1024
    $region29: #{target_forward_and_loss.1} parent=1 // pred_fallthru
      _
    %v51 = vld [vmem:[%s0] sm:$0xf]
    %v52 = vld [vmem:[%s0 + $0x4] sm:$0xf]
    %v53 = vld [vmem:[#allocation2] sm:$0xf]
    %v54 = vld [vmem:[#allocation2 + $0x4] sm:$0xf]
    %v55 = vld [vmem:[#allocation2 + $0x8] sm:$0xf]
    %v56 = vld [vmem:[#allocation2 + $0xc] sm:$0xf]
    %v57 = vld [vmem:[#allocation2 + $0x10] sm:$0xf]
    %v58 = vld [vmem:[#allocation2 + $0x14] sm:$0xf]
    %v59 = vld [vmem:[#allocation2 + $0x18] sm:$0xf]
    %v60 = vld [vmem:[#allocation2 + $0x1c] sm:$0xf]
    %v61 = vld [vmem:[#allocation2 + $0x20] sm:$0xf]
    %v62 = vld [vmem:[#allocation2 + $0x24] sm:$0xf]
    %v63 = vld [vmem:[#allocation2 + $0x28] sm:$0xf]
    %v64 = vld [vmem:[#allocation2 + $0x2c] sm:$0xf]
    %v65 = vld [vmem:[#allocation2 + $0x30] sm:$0xf]
    %v66 = vld [vmem:[#allocation2 + $0x34] sm:$0xf]
    %v67 = vld [vmem:[#allocation2 + $0x38] sm:$0xf]
    %v68 = vld [vmem:[#allocation2 + $0x3c] sm:$0xf]
    %v69 = vld [vmem:[%s2] sm:$0x1]
    %v71 = vlaneseq
    %v72 = vshrl.u32 %v71, 7
    %v73 = vsub.s32 0, %v72
    %v74 = vrot.slane %v69, %v73
    %v78 = vunpack.c.l.b16 %v51
    %v79 = vunpack.c.l.b16 %v52
    %v80 = vpack.c.b16 %v79, %v78
    %v98 = vunpack.c.l.b16 %v53
    %v99 = vunpack.c.l.b16 %v54
    %v100 = vunpack.c.l.b16 %v55
    %v101 = vunpack.c.l.b16 %v56
    %v102 = vunpack.c.l.b16 %v57
    %v103 = vunpack.c.l.b16 %v58
    %v104 = vunpack.c.l.b16 %v59
    %v105 = vunpack.c.l.b16 %v60
    %v106 = vunpack.c.l.b16 %v61
    %v107 = vunpack.c.l.b16 %v62
    %v108 = vunpack.c.l.b16 %v63
    %v109 = vunpack.c.l.b16 %v64
    %v110 = vunpack.c.l.b16 %v65
    %v111 = vunpack.c.l.b16 %v66
    %v112 = vunpack.c.l.b16 %v67
    %v113 = vunpack.c.l.b16 %v68
    %v114 = vpack.c.b16 %v99, %v98
    %v115 = vpack.c.b16 %v101, %v100
    %v116 = vpack.c.b16 %v103, %v102
    %v117 = vpack.c.b16 %v105, %v104
    %v118 = vpack.c.b16 %v107, %v106
    %v119 = vpack.c.b16 %v109, %v108
    %v120 = vpack.c.b16 %v111, %v110
    %v121 = vpack.c.b16 %v113, %v112
    %130 = vmatprep.subr.bf16.mxu0 0
    %131 = vmatpush1.bf16.msra.mxu0 %v114
    %132 = vmatprep.subr.bf16.mxu0 0
    %133 = vmatpush1.bf16.msra.mxu0 %v115
    %134 = vmatprep.subr.bf16.mxu0 0
    %135 = vmatpush1.bf16.msra.mxu0 %v116
    %136 = vmatprep.subr.bf16.mxu0 0
    %137 = vmatpush1.bf16.msra.mxu0 %v117
    %138 = vmatprep.subr.bf16.mxu0 0
    %139 = vmatpush1.bf16.msra.mxu0 %v118
    %140 = vmatprep.subr.bf16.mxu0 0
    %141 = vmatpush1.bf16.msra.mxu0 %v119
    %142 = vmatprep.subr.bf16.mxu0 0
    %143 = vmatpush1.bf16.msra.mxu0 %v120
    %144 = vmatprep.subr.bf16.mxu0 0
    %145 = vmatpush1.bf16.msra.mxu0 %v121
    %146 = vmatprep.subr.bf16.mxu0 0
    %147 = vmatpush1.bf16.msra.mxu0 0
    %148 = vmatprep.subr.bf16.mxu0 0
    %149 = vmatpush1.bf16.msra.mxu0 0
    %150 = vmatprep.subr.bf16.mxu0 0
    %151 = vmatpush1.bf16.msra.mxu0 0
    %152 = vmatprep.subr.bf16.mxu0 0
    %153 = vmatpush1.bf16.msra.mxu0 0
    %154 = vmatprep.subr.bf16.mxu0 0
    %155 = vmatpush1.bf16.msra.mxu0 0
    %156 = vmatprep.subr.bf16.mxu0 0
    %157 = vmatpush1.bf16.msra.mxu0 0
    %158 = vmatprep.subr.bf16.mxu0 0
    %159 = vmatpush1.bf16.msra.mxu0 0
    %160 = vmatprep.subr.bf16.mxu0 0
    %161 = vmatpush1.bf16.msra.mxu0 0
    %162 = vmatprep.mubr.bf16.mxu0 0
    %163 = vmatmul.mubr.bf16.gmra.mrb[0].mxu0 %v80
    %v164 = vpop.f32.mrb[0].mxu0
    %v165 = vadd.f32 %v74, %v164
    %v166 = vpop.f32.mrb[0].mxu0
    %v167 = vpop.f32.mrb[0].mxu0
    %v168 = vadd.f32 %v74, %v167
    %v169 = vpop.f32.mrb[0].mxu0
    %170 = vdwg.mxu0
    %v171 = vmax.f32 %v165, 0.0
    %v172 = vmax.f32 %v168, 0.0
    %v173 = vpack.c.bf16 %v172, %v171
    %v174 = vld [vmem:[#allocation4] sm:$0xf]
    %v175 = vld [vmem:[#allocation4 + $0x4] sm:$0xf]
    %v176 = vld [vmem:[#allocation4 + $0x8] sm:$0xf]
    %v177 = vld [vmem:[#allocation4 + $0xc] sm:$0xf]
    %v178 = vld [vmem:[#allocation4 + $0x10] sm:$0xf]
    %v179 = vld [vmem:[#allocation4 + $0x14] sm:$0xf]
    %v180 = vld [vmem:[#allocation4 + $0x18] sm:$0xf]
    %v181 = vld [vmem:[#allocation4 + $0x1c] sm:$0xf]
    %v182 = vld [vmem:[#allocation4 + $0x20] sm:$0xf]
    %v183 = vld [vmem:[#allocation4 + $0x24] sm:$0xf]
    %v184 = vld [vmem:[#allocation4 + $0x28] sm:$0xf]
    %v185 = vld [vmem:[#allocation4 + $0x2c] sm:$0xf]
    %v186 = vld [vmem:[#allocation4 + $0x30] sm:$0xf]
    %v187 = vld [vmem:[#allocation4 + $0x34] sm:$0xf]
    %v188 = vld [vmem:[#allocation4 + $0x38] sm:$0xf]
    %v189 = vld [vmem:[#allocation4 + $0x3c] sm:$0xf]
    %v190 = vld [vmem:[%s4] sm:$0x1]
    %v192 = vlaneseq
    %v193 = vshrl.u32 %v192, 7
    %v194 = vsub.s32 0, %v193
    %v195 = vrot.slane %v190, %v194
    %v213 = vunpack.c.l.b16 %v174
    %v214 = vunpack.c.l.b16 %v175
    %v215 = vunpack.c.l.b16 %v176
    %v216 = vunpack.c.l.b16 %v177
    %v217 = vunpack.c.l.b16 %v178
    %v218 = vunpack.c.l.b16 %v179
    %v219 = vunpack.c.l.b16 %v180
    %v220 = vunpack.c.l.b16 %v181
    %v221 = vunpack.c.l.b16 %v182
    %v222 = vunpack.c.l.b16 %v183
    %v223 = vunpack.c.l.b16 %v184
    %v224 = vunpack.c.l.b16 %v185
    %v225 = vunpack.c.l.b16 %v186
    %v226 = vunpack.c.l.b16 %v187
    %v227 = vunpack.c.l.b16 %v188
    %v228 = vunpack.c.l.b16 %v189
    %v229 = vpack.c.b16 %v214, %v213
    %v230 = vpack.c.b16 %v216, %v215
    %v231 = vpack.c.b16 %v218, %v217
    %v232 = vpack.c.b16 %v220, %v219
    %v233 = vpack.c.b16 %v222, %v221
    %v234 = vpack.c.b16 %v224, %v223
    %v235 = vpack.c.b16 %v226, %v225
    %v236 = vpack.c.b16 %v228, %v227
    %245 = vmatprep.subr.bf16.mxu0 0
    %246 = vmatpush1.bf16.msra.mxu0 %v229
    %247 = vmatprep.subr.bf16.mxu0 0
    %248 = vmatpush1.bf16.msra.mxu0 %v230
    %249 = vmatprep.subr.bf16.mxu0 0
    %250 = vmatpush1.bf16.msra.mxu0 %v231
    %251 = vmatprep.subr.bf16.mxu0 0
    %252 = vmatpush1.bf16.msra.mxu0 %v232
    %253 = vmatprep.subr.bf16.mxu0 0
    %254 = vmatpush1.bf16.msra.mxu0 %v233
    %255 = vmatprep.subr.bf16.mxu0 0
    %256 = vmatpush1.bf16.msra.mxu0 %v234
    %257 = vmatprep.subr.bf16.mxu0 0
    %258 = vmatpush1.bf16.msra.mxu0 %v235
    %259 = vmatprep.subr.bf16.mxu0 0
    %260 = vmatpush1.bf16.msra.mxu0 %v236
    %261 = vmatprep.subr.bf16.mxu0 0
    %262 = vmatpush1.bf16.msra.mxu0 0
    %263 = vmatprep.subr.bf16.mxu0 0
    %264 = vmatpush1.bf16.msra.mxu0 0
    %265 = vmatprep.subr.bf16.mxu0 0
    %266 = vmatpush1.bf16.msra.mxu0 0
    %267 = vmatprep.subr.bf16.mxu0 0
    %268 = vmatpush1.bf16.msra.mxu0 0
    %269 = vmatprep.subr.bf16.mxu0 0
    %270 = vmatpush1.bf16.msra.mxu0 0
    %271 = vmatprep.subr.bf16.mxu0 0
    %272 = vmatpush1.bf16.msra.mxu0 0
    %273 = vmatprep.subr.bf16.mxu0 0
    %274 = vmatpush1.bf16.msra.mxu0 0
    %275 = vmatprep.subr.bf16.mxu0 0
    %276 = vmatpush1.bf16.msra.mxu0 0
    %277 = vmatprep.mubr.bf16.mxu0 0
    %278 = vmatmul.mubr.bf16.gmra.mrb[0].mxu0 %v173
    %v279 = vpop.f32.mrb[0].mxu0
    %v280 = vadd.f32 %v195, %v279
    %v281 = vpop.f32.mrb[0].mxu0
    %v282 = vpop.f32.mrb[0].mxu0
    %v283 = vadd.f32 %v195, %v282
    %v284 = vpop.f32.mrb[0].mxu0
    %285 = vdwg.mxu0
    %286 = vst [vmem:[%s5] sm:$0xff] %v280
    %287 = vst [vmem:[%s5 + $0x8] sm:$0xff] %v283
    %s288 = smul.u32 0, 16
    %v289 = vlaneseq
    %v290 = vshrl.u32 %v289, 7
    %v291 = vadd.s32 %v290, 8
    %v292 = vstv %s288
    %v293 = vadd.s32 %v292, %v290
    %v294 = vadd.s32 %v292, %v291
    %vm295 = vcmp.lt.s32.totalorder %v293, 8
    %vm296 = vcmp.lt.s32.totalorder %v294, 8
    %v297 = vsel %vm295, 1, 0
    %v298 = vsel %vm296, 1, 0
    %v299 = vcvt.s32.f32 %v297
    %v300 = vcvt.s32.f32 %v298
    %v301 = vmul.f32 %v280, %v280
    %v302 = vmul.f32 %v283, %v283
    %303 = vadd.xlane.f32.xlu0 %v301
    %v304 = vpop.xlane.xlu0 %303
    %305 = vadd.xlane.f32.xlu0 %v302
    %v306 = vpop.xlane.xlu0 %305
    %v307 = vmax.f32 %v304, 1e-24
    %v308 = vmax.f32 %v306, 1e-24
    %v309 = vrsqrt.pop %v307
    %v310 = vrsqrt.pop %v308
    %v311 = vmul.f32 %v280, %v309
    %v312 = vmul.f32 %v283, %v310
    %v313 = vmul.f32 %v311, %v299
    %v314 = vmul.f32 %v312, %v300
    %v315 = vadd.f32 %v313, %v314
    %v316 = vrot.slane %v315, 4
    %v317 = vadd.f32 %v315, %v316
    %v318 = vrot.slane %v317, 2
    %v319 = vadd.f32 %v317, %v318
    %v320 = vrot.slane %v319, 1
    %v321 = vadd.f32 %v319, %v320
    %v322 = vmul.f32 %v304, %v309
    %v323 = vmul.f32 %v306, %v310
    %v324 = vmul.f32 %v322, %v309
    %v325 = vmul.f32 %v323, %v310
    %v326 = vmul.f32 %v324, %v299
    %v327 = vmul.f32 %v325, %v300
    %vm328 = vcmask 7168
    %v329 = vsel %vm328, %v326, 0.0
    %v330 = vsel %vm328, %v327, 0.0
    %v331 = vadd.f32 %v329, %v330
    %332 = vadd.xlane.f32.xlu0 %v331
    %v333 = vpop.xlane.xlu0 %332
    %v334 = vrot.slane %v333, 4
    %v335 = vadd.f32 %v333, %v334
    %v336 = vrot.slane %v335, 2
    %v337 = vadd.f32 %v335, %v336
    %v338 = vrot.slane %v337, 1
    %v339 = vadd.f32 %v337, %v338
    %s340 = vtos %v339
    %v341 = vstv %s340
    %vm342 = vcmask 1040384
    %v343 = vsel %vm342, %v321, %v341
    %vm344 = vcmask 1041408
    %v345 = vsel %vm344, %v343, 0.0
    %346 = vst [vmem:[%s6] sm:$0xff] %v345
    // Predicated region
    $region30: #{target_forward_and_loss.1} parent=1 // pred_check
      _
    $region31: #{target_forward_and_loss.1} parent=1 // pred_check_branch
      %348 = sbr.rel (0) target = $region33
    $region32: #{target_forward_and_loss.1} parent=1 // pred_region
      _
    $region33: #{target_forward_and_loss.1} parent=1 // pred_fallthru
      _
    // Predicated region
    $region34: #{target_forward_and_loss.1} parent=1 // pred_check
      _
    $region35: #{target_forward_and_loss.1} parent=1 // pred_check_branch
      %350 = sbr.rel (0) target = $region37
    $region36: #{target_forward_and_loss.1} parent=1 // pred_region
      _
    $region37: #{target_forward_and_loss.1} parent=1 // pred_fallthru
      _
    // Predicated region
    $region38: #{target_forward_and_loss.1} parent=1 // pred_check
      _
    $region39: #{target_forward_and_loss.1} parent=1 // pred_check_branch
      %352 = sbr.rel (0) target = $region41
    $region40: #{target_forward_and_loss.1} parent=1 // pred_region
      _
    $region41: #{target_forward_and_loss.1} parent=1 // pred_fallthru
      _
    // Predicated region
    $region42: #{target_forward_and_loss.1} parent=1 // pred_check
      _
    $region43: #{target_forward_and_loss.1} parent=1 // pred_check_branch
      %354 = sbr.rel (0) target = $region45
    $region44: #{target_forward_and_loss.1} parent=1 // pred_region
      _
    $region45: #{target_forward_and_loss.1} parent=1 // pred_fallthru
      _
    %355 = vsyncpa [#allocation3], 1
    %356 = vsyncpa [#allocation5], 1

</llo_original>
